<compile_context>
chip_gen: v5e
topology: v5e:2x2
jax: 0.10.0
libtpu: 0.0.40
codegen_flags: <defaults>
</compile_context>

<pallas_src>
import functools

import jax
import jax.numpy as jnp
from jax.experimental import pallas as pl
from jax.experimental.pallas import tpu as pltpu


def _tv_loss_kernel(x_ref, wmask_ref, hmask_ref, out_ref, *, W, HW):
    """x_ref: (T, H*W) block of flattened planes (input dtype).
    wmask_ref/hmask_ref: (1, H*W) float {0,1} validity masks.
    out_ref: (1, 128) per-block partial (scalar in lane 0 .. broadcast)."""
    x = x_ref[...].astype(jnp.float32)                     # (T, HW)

    # Forward neighbours via lane rotation (XLU slot, no shifted-slice copies).
    x_right = pltpu.roll(x, (HW - 1) % HW, axis=1)         # x[:, (j+1) % HW]
    x_down = pltpu.roll(x, (HW - W) % HW, axis=1)          # x[:, (j+W) % HW]

    dw = (x_right - x) * wmask_ref[...]   # mask kills last column of each row (wrap)
    dh = (x_down - x) * hmask_ref[...]    # mask kills last image row (wrap)

    partial = jnp.sum(dw * dw + dh * dh)                   # scalar for this block
    out_ref[...] = jnp.zeros((1, 128), jnp.float32) + partial


def tv_loss(img, weight):
    """img: (B, C, H, W) array (NCHW). weight: scalar. Returns scalar f32 loss."""
    B, C, H, W = img.shape
    BC, HW = B * C, H * W
    x2 = img.reshape(BC, HW)  # free reshape for contiguous NCHW; stays in input dtype

    # --- choose planes-per-block so a double-buffered block stays well inside VMEM
    itemsize = jnp.dtype(img.dtype).itemsize
    plane_bytes = HW * itemsize
    budget = 4 * 1024 * 1024                               # per input buffer
    t_fit = max(1, budget // plane_bytes)
    if t_fit >= BC:
        T = BC                                             # whole tensor in one block
    elif t_fit >= 8:
        T = (t_fit // 8) * 8                               # sublane-aligned block
    else:
        # TODO(synk): tile along H*W (with a one-row halo) for planes > ~4 MiB.
        T = 1
    G = pl.cdiv(BC, T)
    if G * T != BC:
        # Zero planes contribute exactly 0 to the TV loss, so padding is safe.
        x2 = jnp.pad(x2, ((0, G * T - BC), (0, 0)))

    # {0,1} masks of valid difference positions in the flattened plane.
    j = jnp.arange(HW, dtype=jnp.int32)
    w_mask = ((j % W) != (W - 1)).astype(jnp.float32).reshape(1, HW)
    h_mask = (j < (H - 1) * W).astype(jnp.float32).reshape(1, HW)

    kernel = functools.partial(_tv_loss_kernel, W=W, HW=HW)
    partials = pl.pallas_call(
        kernel,
        out_shape=jax.ShapeDtypeStruct((G, 1, 128), jnp.float32),
        grid_spec=pltpu.PrefetchScalarGridSpec(
            num_scalar_prefetch=0,
            grid=(G,),
            in_specs=[
                pl.BlockSpec((T, HW), lambda i: (i, 0)),       # T flattened planes
                pl.BlockSpec((1, HW), lambda i: (0, 0)),       # w mask (revisited)
                pl.BlockSpec((1, HW), lambda i: (0, 0)),       # h mask (revisited)
            ],
            out_specs=pl.BlockSpec((None, 1, 128), lambda i: (i, 0, 0)),
        ),
        compiler_params=pltpu.CompilerParams(
            dimension_semantics=("parallel",),    # per-block partials -> megacore OK
            vmem_limit_bytes=32 * 1024 * 1024,
        ),
        cost_estimate=pl.CostEstimate(
            flops=6 * BC * HW,
            bytes_accessed=BC * HW * itemsize + 2 * HW * 4 + G * 128 * 4,
            transcendentals=0,
        ),
    )(x2, w_mask, h_mask)

    total = jnp.sum(partials[:, 0, 0])            # tiny final reduce in the wrapper
    return jnp.asarray(weight, jnp.float32) * total


def tv_loss_ref(img, weight):
    """Pure-JAX reference matching the PyTorch forward."""
    img = img.astype(jnp.float32)
    w_var = jnp.sum((img[:, :, :, 1:] - img[:, :, :, :-1]) ** 2)
    h_var = jnp.sum((img[:, :, 1:, :] - img[:, :, :-1, :]) ** 2)
    return weight * (w_var + h_var)


if __name__ == "__main__":
    key = jax.random.PRNGKey(0)
    B, C, H, W = 2, 4, 16, 16
    img = jax.random.normal(key, (B, C, H, W), dtype=jnp.float32)
    weight = 2.5

    loss = tv_loss(img, weight)
    loss = jax.block_until_ready(loss)

    ref = tv_loss_ref(img, weight)
    assert jnp.allclose(loss, ref, rtol=2e-5, atol=1e-4), (loss, ref)
    print("KERNEL_OK")
</pallas_src>

<mosaic_0001>
module attributes {stable_mosaic.version = 11 : i64} {
  func.func @_tv_loss_kernel(%arg0: i32, %arg1: memref<8x256xf32, #tpu.memory_space<vmem>>, %arg2: memref<1x256xf32, #tpu.memory_space<vmem>>, %arg3: memref<1x256xf32, #tpu.memory_space<vmem>>, %arg4: memref<1x1x128xf32, #tpu.memory_space<vmem>>) attributes {dimension_semantics = [#tpu.dimension_semantics<parallel>], iteration_bounds = array<i64: 1>, scalar_prefetch = 0 : i64, scratch_operands = 0 : i64, tpu.core_type = #tpu.core_type<tc>, window_params = [{transform_indices = @transform_0, window_bounds = array<i64: 8, 256>}, {pipeline_mode = #tpu.pipeline_mode<synchronous>, transform_indices = @transform_1, window_bounds = array<i64: 1, 256>}, {pipeline_mode = #tpu.pipeline_mode<synchronous>, transform_indices = @transform_2, window_bounds = array<i64: 1, 256>}, {transform_indices = @transform_3, window_bounds = array<i64: 1, 1, 128>}]} {
    %c0 = arith.constant 0 : index
    %c0_0 = arith.constant 0 : index
    %0 = vector.load %arg1[%c0, %c0_0] : memref<8x256xf32, #tpu.memory_space<vmem>>, vector<8x256xf32>
    %c255_i32 = arith.constant 255 : i32
    %1 = tpu.dynamic_rotate %0 by %c255_i32 dim 1 : vector<8x256xf32>, i32 -> vector<8x256xf32>
    %c240_i32 = arith.constant 240 : i32
    %2 = tpu.dynamic_rotate %0 by %c240_i32 dim 1 : vector<8x256xf32>, i32 -> vector<8x256xf32>
    %3 = arith.subf %1, %0 : vector<8x256xf32>
    %c0_1 = arith.constant 0 : index
    %c0_2 = arith.constant 0 : index
    %4 = vector.load %arg2[%c0_1, %c0_2] : memref<1x256xf32, #tpu.memory_space<vmem>>, vector<1x256xf32>
    %5 = vector.broadcast %4 : vector<1x256xf32> to vector<8x256xf32>
    %6 = arith.mulf %3, %5 : vector<8x256xf32>
    %7 = arith.subf %2, %0 : vector<8x256xf32>
    %c0_3 = arith.constant 0 : index
    %c0_4 = arith.constant 0 : index
    %8 = vector.load %arg3[%c0_3, %c0_4] : memref<1x256xf32, #tpu.memory_space<vmem>>, vector<1x256xf32>
    %9 = vector.broadcast %8 : vector<1x256xf32> to vector<8x256xf32>
    %10 = arith.mulf %7, %9 : vector<8x256xf32>
    %11 = arith.mulf %6, %6 : vector<8x256xf32>
    %12 = arith.mulf %10, %10 : vector<8x256xf32>
    %13 = arith.addf %11, %12 : vector<8x256xf32>
    %14 = vector.shape_cast %13 : vector<8x256xf32> to vector<1x8x256xf32>
    %cst = arith.constant dense<0.000000e+00> : vector<1xf32>
    %15 = vector.multi_reduction <add>, %14, %cst [1, 2] : vector<1x8x256xf32> to vector<1xf32>
    %16 = vector.shape_cast %15 : vector<1xf32> to vector<1x1x1xf32>
    %17 = vector.extract %16[0, 0, 0] : f32 from vector<1x1x1xf32>
    %cst_5 = arith.constant 0.000000e+00 : f32
    %18 = vector.broadcast %cst_5 : f32 to vector<1x128xf32>
    %19 = vector.broadcast %17 : f32 to vector<1x128xf32>
    %20 = arith.addf %18, %19 : vector<1x128xf32>
    %c0_6 = arith.constant 0 : index
    %c0_7 = arith.constant 0 : index
    %c0_8 = arith.constant 0 : index
    %21 = vector.load %arg4[%c0_6, %c0_7, %c0_8] : memref<1x1x128xf32, #tpu.memory_space<vmem>>, vector<1x1x128xf32>
    %22 = vector.shape_cast %21 : vector<1x1x128xf32> to vector<1x128xf32>
    %23 = vector.shape_cast %20 : vector<1x128xf32> to vector<1x1x128xf32>
    tpu.vector_store %arg4[%c0_6, %c0_7, %c0_8], %23 {strides = array<i32>} : memref<1x1x128xf32, #tpu.memory_space<vmem>>, vector<1x1x128xf32>,
    return
  }
  func.func @transform_0(%arg0: i32) -> (i32, i32) {
    %c0_i32 = arith.constant 0 : i32
    %c0_i32_0 = arith.constant 0 : i32
    return %arg0, %c0_i32 : i32, i32
  }
  func.func @transform_1(%arg0: i32) -> (i32, i32) {
    %c0_i32 = arith.constant 0 : i32
    %c0_i32_0 = arith.constant 0 : i32
    %c0_i32_1 = arith.constant 0 : i32
    return %c0_i32, %c0_i32_0 : i32, i32
  }
  func.func @transform_2(%arg0: i32) -> (i32, i32) {
    %c0_i32 = arith.constant 0 : i32
    %c0_i32_0 = arith.constant 0 : i32
    %c0_i32_1 = arith.constant 0 : i32
    return %c0_i32, %c0_i32_0 : i32, i32
  }
  func.func @transform_3(%arg0: i32) -> (i32, i32, i32) {
    %c0_i32 = arith.constant 0 : i32
    %c0_i32_0 = arith.constant 0 : i32
    %c0_i32_1 = arith.constant 0 : i32
    return %arg0, %c0_i32, %c0_i32_0 : i32, i32, i32
  }
}

</mosaic_0001>

<llo_original>
// kernel: tpu_custom_call.1
$region0: #{tpu_custom_call.1}
  #allocation0 [shape = 'u32[]', space=smem, size = 0x4, offset = 0x4, fixed_abs, tag = 'smem constant byte address 0x4 - core index']
  #allocation1 [shape = 'u32[72,128]{1,0:T(1,128)}', space=vmem, size = 0x9000, scoped, tag = 'internal scratch']
  %s0 = inlined_call_operand.hbm [shape: f32[8,256], index: 0, kind: input, shape index: {}]
  %s1 = inlined_call_operand.hbm [shape: f32[1,256], index: 1, kind: input, shape index: {}]
  %s2 = inlined_call_operand.hbm [shape: f32[1,256], index: 2, kind: input, shape index: {}]
  %s3 = inlined_call_operand.hbm [shape: f32[1,1,128], index: 3, kind: output, shape index: {}]
  %s4 = sld [smem:[#allocation0]]
  $region34: #{tpu_custom_call.1} parent=0
    _
  %s6 = ssub.s32 1, %s4
  %s7 = scalar_select 0, %s6, %s4
  $region1: #{tpu_custom_call.1} parent=0
    #allocation2 [shape = 'u8[8192]{0}', space=vmem, size = 0x2000, scoped, tag = 'input window, operand 0, single buffered']
    #allocation3 [shape = 's32[1]{0}', space=sflag, size = 0x4, scoped, tag = 'scoped memory for tpu_custom_call.1']
    #allocation4 [shape = 's32[1]{0}', space=sflag, size = 0x4, scoped, tag = 'scoped memory for tpu_custom_call.1']
    #allocation5 [shape = 'u8[1024]{0}', space=vmem, size = 0x400, scoped, tag = 'input window, operand 1, single buffered']
    #allocation6 [shape = 's32[1]{0}', space=sflag, size = 0x4, scoped, tag = 'scoped memory for tpu_custom_call.1']
    #allocation7 [shape = 'u8[1024]{0}', space=vmem, size = 0x400, scoped, tag = 'input window, operand 2, single buffered']
    #allocation8 [shape = 'u8[512]{0}', space=vmem, size = 0x400, scoped, tag = 'output window, operand 0, single buffered']
    %8 = vsyncpa [#allocation3], 0
    %9 = vsyncpa [#allocation6], 0
    %10 = vsyncpa [#allocation4], 0
    // Predicated region
    $region2: #{tpu_custom_call.1} parent=1 // pred_check
      _
    $region3: #{tpu_custom_call.1} parent=1 // pred_check_branch
      %12 = sbr.rel (0) target = $region5
    $region4: #{tpu_custom_call.1} parent=1 // pred_region
      %14 = vsyncadd [#allocation3], 0
      %s16 = sshll.u32 %s0, 4
      %s17 = int_to_ptr.hbm [resolvable:$true] %s16
      %s18 = sshll.u32 [#allocation2], 4
      %s19 = int_to_ptr.vmem [resolvable:$true] %s18
      %21 = dma.hbm_to_vmem [thread:$0]  %s17, 256, %s19, [#allocation3]
    $region5: #{tpu_custom_call.1} parent=1 // pred_fallthru
      _
    // Predicated region
    $region6: #{tpu_custom_call.1} parent=1 // pred_check
      _
    $region7: #{tpu_custom_call.1} parent=1 // pred_check_branch
      %23 = sbr.rel (0) target = $region9
    $region8: #{tpu_custom_call.1} parent=1 // pred_region
      %25 = vsyncadd [#allocation6], 0
      %s27 = sshll.u32 %s1, 4
      %s28 = int_to_ptr.hbm [resolvable:$true] %s27
      %s29 = sshll.u32 [#allocation5], 4
      %s30 = int_to_ptr.vmem [resolvable:$true] %s29
      %32 = dma.hbm_to_vmem [thread:$0]  %s28, 32, %s30, [#allocation6]
    $region9: #{tpu_custom_call.1} parent=1 // pred_fallthru
      _
    // Predicated region
    $region10: #{tpu_custom_call.1} parent=1 // pred_check
      _
    $region11: #{tpu_custom_call.1} parent=1 // pred_check_branch
      %34 = sbr.rel (0) target = $region13
    $region12: #{tpu_custom_call.1} parent=1 // pred_region
      %36 = vsyncadd [#allocation6], 0
      %s38 = sshll.u32 %s2, 4
      %s39 = int_to_ptr.hbm [resolvable:$true] %s38
      %s40 = sshll.u32 [#allocation7], 4
      %s41 = int_to_ptr.vmem [resolvable:$true] %s40
      %43 = dma.hbm_to_vmem [thread:$0]  %s39, 32, %s41, [#allocation6]
    $region13: #{tpu_custom_call.1} parent=1 // pred_fallthru
      _
    // Predicated region
    $region14: #{tpu_custom_call.1} parent=1 // pred_check
      _
    $region15: #{tpu_custom_call.1} parent=1 // pred_check_branch
      %45 = sbr.rel (0) target = $region17
    $region16: #{tpu_custom_call.1} parent=1 // pred_region
      %47 = dma.done [#allocation3], 256
    $region17: #{tpu_custom_call.1} parent=1 // pred_fallthru
      _
    // Predicated region
    $region18: #{tpu_custom_call.1} parent=1 // pred_check
      _
    $region19: #{tpu_custom_call.1} parent=1 // pred_check_branch
      %49 = sbr.rel (0) target = $region21
    $region20: #{tpu_custom_call.1} parent=1 // pred_region
      %51 = dma.done [#allocation6], 32
    $region21: #{tpu_custom_call.1} parent=1 // pred_fallthru
      _
    // Predicated region
    $region22: #{tpu_custom_call.1} parent=1 // pred_check
      _
    $region23: #{tpu_custom_call.1} parent=1 // pred_check_branch
      %53 = sbr.rel (0) target = $region25
    $region24: #{tpu_custom_call.1} parent=1 // pred_region
      %55 = dma.done [#allocation6], 32
    $region25: #{tpu_custom_call.1} parent=1 // pred_fallthru
      _
    %v56 = vld [vmem:[#allocation2] sm:$0xff]
    %v57 = vld [vmem:[#allocation2 + $0x8] sm:$0xff]
    %58 = vrot.lane.b32.xlu0 %v56, 127
    %v59 = vpop.permute.xlu0 %58
    %60 = vrot.lane.b32.xlu0 %v57, 127
    %v61 = vpop.permute.xlu0 %60
    %v62 = vlaneseq
    %v63 = vand.u32 %v62, 127
    %vm64 = vcmp.lt.s32.totalorder %v63, 127
    %v65 = vsel %vm64, %v59, %v61
    %v66 = vsel %vm64, %v61, %v59
    %67 = vrot.lane.b32.xlu0 %v56, 112
    %v68 = vpop.permute.xlu0 %67
    %69 = vrot.lane.b32.xlu0 %v57, 112
    %v70 = vpop.permute.xlu0 %69
    %vm71 = vcmp.lt.s32.totalorder %v63, 112
    %v72 = vsel %vm71, %v68, %v70
    %v73 = vsel %vm71, %v70, %v68
    %v74 = vsub.f32 %v65, %v56
    %v75 = vsub.f32 %v66, %v57
    %v76 = vld [vmem:[#allocation5] sm:$0x3]
    %v78 = vperm.slane %v76, 0
    %v79 = vperm.slane %v76, 1
    %v82 = vmul.f32 %v74, %v78
    %v83 = vmul.f32 %v75, %v79
    %v84 = vsub.f32 %v72, %v56
    %v85 = vsub.f32 %v73, %v57
    %v86 = vld [vmem:[#allocation7] sm:$0x3]
    %v88 = vperm.slane %v86, 0
    %v89 = vperm.slane %v86, 1
    %v92 = vmul.f32 %v84, %v88
    %v93 = vmul.f32 %v85, %v89
    %v94 = vmul.f32 %v82, %v82
    %v95 = vmul.f32 %v83, %v83
    %v96 = vmul.f32 %v92, %v92
    %v97 = vmul.f32 %v93, %v93
    %v98 = vadd.f32 %v94, %v96
    %v99 = vadd.f32 %v95, %v97
    %v100 = vadd.f32 %v98, %v99
    %101 = vadd.xlane.f32.xlu0 %v100
    %v102 = vpop.xlane.xlu0 %101
    %v103 = vrot.slane %v102, 4
    %v104 = vadd.f32 %v102, %v103
    %v105 = vrot.slane %v104, 2
    %v106 = vadd.f32 %v104, %v105
    %v107 = vrot.slane %v106, 1
    %v108 = vadd.f32 %v106, %v107
    %s109 = vtos %v108
    %v110 = vstv %s109
    %v111 = vadd.f32 %v110, 0.0
    %112 = vst [vmem:[#allocation8] sm:$0x1] %v111
    // Predicated region
    $region26: #{tpu_custom_call.1} parent=1 // pred_check
      _
    $region27: #{tpu_custom_call.1} parent=1 // pred_check_branch
      %114 = sbr.rel (0) target = $region29
    $region28: #{tpu_custom_call.1} parent=1 // pred_region
      %116 = vsyncadd [#allocation4], 0
      %s118 = sshll.u32 [#allocation8], 4
      %s119 = int_to_ptr.vmem [resolvable:$true] %s118
      %s120 = sshll.u32 %s3, 4
      %s121 = int_to_ptr.hbm [resolvable:$true] %s120
      %123 = dma.vmem_to_hbm [thread:$0]  %s119, 16, %s121, [#allocation4]
    $region29: #{tpu_custom_call.1} parent=1 // pred_fallthru
      _
    // Predicated region
    $region30: #{tpu_custom_call.1} parent=1 // pred_check
      _
    $region31: #{tpu_custom_call.1} parent=1 // pred_check_branch
      %125 = sbr.rel (0) target = $region33
    $region32: #{tpu_custom_call.1} parent=1 // pred_region
      %127 = dma.done [#allocation4], 16
    $region33: #{tpu_custom_call.1} parent=1 // pred_fallthru
      _
    %128 = vsyncpa [#allocation3], 1
    %129 = vsyncpa [#allocation6], 1
    %130 = vsyncpa [#allocation4], 1

</llo_original>
